<compile_context>
chip_gen: v5e
topology: v5e:2x2
jax: 0.10.0
libtpu: 0.0.40
codegen_flags: <defaults>
</compile_context>

<pallas_src>
import functools
import math

import jax
import jax.numpy as jnp
from jax import lax
from jax.experimental import pallas as pl
from jax.experimental.pallas import tpu as pltpu

_LANES = 128


def _round_up(x: int, m: int) -> int:
    return (x + m - 1) // m * m


def _pad_to(x, shape):
    return jnp.pad(x, [(0, t - s) for s, t in zip(x.shape, shape)])


def _rec_net_kernel(
    y_ref,                 # (R, ND)         R = TS*M rows, flattened host-side
    w_e1_ref, b_e1_ref,    # (ND, Kp_p), (1, Kp_p)      (weights in mm_dtype)
    w_e2_ref, b_e2_ref,    # (Kp_p, Kp_p), (1, Kp_p)    (biases stay f32)
    w_qkv_ref,             # (Kp_p, 3*Kp_p)   fused Q|K|V projection
    w_o_ref,               # (Kp_p, Kp_p)
    w_gt_ref, b_gt_ref,    # (Kp_p, KH), (1, KH)   fused gamma|tau head
    out_ref,               # (R, KH)   [gamma | tau | pad], lane-dense
    *, m: int, kp_pad: int, k_out: int, tau_min: float, scale: float,
    mm_dtype):
    r, _nd = y_ref.shape
    ts = r // m
    cast = lambda x: x.astype(mm_dtype)   # MXU operands only; math stays f32

    # ---- phi_enc: point-wise MLP on all R = TS*M rows at once (fills MXU) --
    x = cast(y_ref[...])
    h = jnp.dot(x, w_e1_ref[...], preferred_element_type=jnp.float32)
    h = jnp.maximum(h + b_e1_ref[...], 0.0)                       # ReLU (f32)
    a = jnp.dot(cast(h), w_e2_ref[...], preferred_element_type=jnp.float32)
    a = a + b_e2_ref[...]                                         # (R, Kp_p)

    # ---- phi_agg: self-attention over M, batched over TS sequences --------
    qkv = jnp.dot(cast(a), w_qkv_ref[...], preferred_element_type=jnp.float32)
    qkv = qkv.reshape(ts, m, 3 * kp_pad)
    q = qkv[:, :, :kp_pad]                 # lane-aligned (128-multiple) slices
    k = qkv[:, :, kp_pad:2 * kp_pad]
    v = qkv[:, :, 2 * kp_pad:]
    # Contract the last dims directly — no explicit k.T / XLU transpose.
    scores = jnp.einsum("smk,snk->smn", cast(q), cast(k),
                        preferred_element_type=jnp.float32) * scale
    scores = scores - jnp.max(scores, axis=-1, keepdims=True)     # stable softmax
    p = jnp.exp(scores)
    # approx=True -> EUP vrcp (otherwise-idle slot); ~2^-12 relative error.
    p = p * pl.reciprocal(jnp.sum(p, axis=-1, keepdims=True), approx=True)
    ctx = jnp.einsum("smn,snk->smk", cast(p), cast(v),
                     preferred_element_type=jnp.float32)          # (TS, M, Kp_p)
    b = jnp.dot(cast(ctx.reshape(r, kp_pad)), w_o_ref[...],
                preferred_element_type=jnp.float32)               # (R, Kp_p)

    # ---- fused gamma/tau heads, single lane-dense output slab -------------
    head = jnp.dot(cast(b), w_gt_ref[...], preferred_element_type=jnp.float32)
    head = head + b_gt_ref[...]                                   # (R, KH)
    col = lax.broadcasted_iota(jnp.int32, head.shape, 1)
    # NOTE: must remain a select — exp() of the gamma columns may overflow but
    # is discarded by the where; do NOT rewrite as a multiply-by-mask.
    out = jnp.where(col < k_out, head, jnp.exp(head) + tau_min)   # [gamma|tau|junk]
    out_ref[...] = out.astype(out_ref.dtype)


def _choose_seqs_per_step(S, M, ND, Kp_p, KH, weight_bytes, *,
                          vmem_limit_bytes, target_rows=512, min_rows=256):
    """Pick sequences-per-step: fill the MXU, fit VMEM, prefer >=2 grid steps."""
    io_bytes = 2 * M * (ND + KH) * 4                     # double-buffered y/out
    act_bytes = M * (7 * Kp_p + 2 * KH) * 4 + 2 * M * M * 4   # f32 intermediates
    per_seq = io_bytes + act_bytes
    budget = int(0.6 * (vmem_limit_bytes - 2 * weight_bytes))  # compiler headroom
    ts_vmem = max(1, budget // per_seq)
    ts_target = max(1, -(-target_rows // M))
    ts = min(S, ts_target, ts_vmem)
    # Prefer >= 2 grid steps (v7x: shards S-tiles across the two TensorCores)
    # as long as each step still feeds >= min_rows rows to the MXU.
    ts_min = max(1, -(-min_rows // M))
    if -(-S // ts) < 2:
        half = -(-S // 2)
        if half >= ts_min:
            ts = min(ts, half)
    # (TS*M) must be a multiple of 8 sublanes for the 2-D BlockSpec.
    g = 8 // math.gcd(M, 8)
    ts = max(g, ts // g * g)
    return min(ts, _round_up(S, g))


def recognition_net_forward(y, params, *, tau_min: float,
                            matmul_dtype=jnp.bfloat16,
                            vmem_limit_bytes: int = 48 * 1024 * 1024,
                            seqs_per_step: int | None = None):
    """y: (S, M, N, D) float32 -> (gamma, tau) each (S, M, K).

    matmul_dtype: jnp.bfloat16 (v6e/v7x fast path, default) or jnp.float32.
    """
    S, M, N, D = y.shape
    ND = N * D
    Kp = params["w_e1"].shape[1]
    K = params["w_g"].shape[1]

    Kp_p = _round_up(Kp, _LANES)          # lane-dense hidden width
    KH = _round_up(2 * K, _LANES)         # lane-dense combined gamma|tau width

    # ---- fuse + zero-pad parameters (host-side glue; exact) ---------------
    # Matmul weights pre-cast to the MXU operand dtype; biases stay f32.
    wdt = matmul_dtype
    w_e1 = _pad_to(params["w_e1"], (ND, Kp_p)).astype(wdt)
    b_e1 = _pad_to(params["b_e1"], (1, Kp_p))
    w_e2 = _pad_to(params["w_e2"], (Kp_p, Kp_p)).astype(wdt)
    b_e2 = _pad_to(params["b_e2"], (1, Kp_p))
    w_qkv = jnp.concatenate(
        [_pad_to(params[n], (Kp_p, Kp_p)) for n in ("w_q", "w_k", "w_v")],
        axis=1).astype(wdt)
    w_o = _pad_to(params["w_o"], (Kp_p, Kp_p)).astype(wdt)
    w_gt = _pad_to(jnp.concatenate([params["w_g"], params["w_t"]], axis=1),
                   (Kp_p, KH)).astype(wdt)
    b_gt = _pad_to(jnp.concatenate([params["b_g"], params["b_t"]], axis=1),
                   (1, KH))
    weights = [w_e1, b_e1, w_e2, b_e2, w_qkv, w_o, w_gt, b_gt]
    weight_bytes = sum(int(w.size) * jnp.dtype(w.dtype).itemsize for w in weights)

    # ---- row-tile (sequences per grid step) --------------------------------
    if seqs_per_step is None:
        TS = _choose_seqs_per_step(S, M, ND, Kp_p, KH, weight_bytes,
                                   vmem_limit_bytes=vmem_limit_bytes)
    else:
        g = 8 // math.gcd(M, 8)
        TS = _round_up(max(1, min(seqs_per_step, S)), g)
    S_pad = _round_up(S, TS)
    R = TS * M                              # rows fed to every matmul per step

    # Flatten to 2-D host-side: matmul LHS sublane dim == block sublane dim,
    # and no in-kernel (TS,M,ND) relayout over the non-128 trailing dim.
    y_flat = y.reshape(S * M, ND)
    if S_pad != S:
        y_flat = jnp.pad(y_flat, ((0, (S_pad - S) * M), (0, 0)))

    def full_spec(arr):
        # Grid-invariant index_map: the pipeliner skips re-DMA when the block
        # index does not change between steps (weights fetched once).
        return pl.BlockSpec(arr.shape, lambda s, _n=arr.ndim: (0,) * _n)

    kernel = functools.partial(
        _rec_net_kernel, m=M, kp_pad=Kp_p, k_out=K, tau_min=tau_min,
        scale=1.0 / math.sqrt(Kp), mm_dtype=matmul_dtype)

    out = pl.pallas_call(
        kernel,
        out_shape=jax.ShapeDtypeStruct((S_pad * M, KH), jnp.float32),
        grid_spec=pltpu.PrefetchScalarGridSpec(
            num_scalar_prefetch=0,
            grid=(S_pad // TS,),
            in_specs=[pl.BlockSpec((R, ND), lambda s: (s, 0))]
                     + [full_spec(w) for w in weights],
            out_specs=pl.BlockSpec((R, KH), lambda s: (s, 0)),
        ),
        compiler_params=pltpu.CompilerParams(
            dimension_semantics=("parallel",),   # shards S-tiles on v7x's 2 TCs
            vmem_limit_bytes=vmem_limit_bytes,   # raises v5e/v6e default limits
        ),
    )(y_flat, *weights)

    out = out.reshape(S_pad, M, KH)
    gamma = out[:S, :, :K]
    tau = out[:S, :, K:2 * K]
    return gamma, tau


def init_params(key, *, nd: int, kp: int, k: int):
    """Deterministic PyTorch-Linear-style init: U(-1/sqrt(fan_in), +1/sqrt(fan_in))."""
    def lin(key, fan_in, fan_out):
        kw, kb = jax.random.split(key)
        bound = 1.0 / math.sqrt(fan_in)
        w = jax.random.uniform(kw, (fan_in, fan_out), jnp.float32, -bound, bound)
        b = jax.random.uniform(kb, (1, fan_out), jnp.float32, -bound, bound)
        return w, b

    keys = jax.random.split(key, 8)
    w_e1, b_e1 = lin(keys[0], nd, kp)
    w_e2, b_e2 = lin(keys[1], kp, kp)
    w_q, _ = lin(keys[2], kp, kp)
    w_k, _ = lin(keys[3], kp, kp)
    w_v, _ = lin(keys[4], kp, kp)
    w_o, _ = lin(keys[5], kp, kp)
    w_g, b_g = lin(keys[6], kp, k)
    w_t, b_t = lin(keys[7], kp, k)
    return dict(w_e1=w_e1, b_e1=b_e1, w_e2=w_e2, b_e2=b_e2,
                w_q=w_q, w_k=w_k, w_v=w_v, w_o=w_o,
                w_g=w_g, b_g=b_g, w_t=w_t, b_t=b_t)


def _reference_forward(y, p, tau_min):
    """Pure-JAX reference matching the kernel semantics (unpadded, unfused, f32)."""
    S, M, N, D = y.shape
    x = y.reshape(S, M, N * D)
    h = jnp.maximum(x @ p["w_e1"] + p["b_e1"], 0.0)
    a = h @ p["w_e2"] + p["b_e2"]
    q = a @ p["w_q"]; k = a @ p["w_k"]; v = a @ p["w_v"]
    sc = jnp.einsum("smk,snk->smn", q, k) / math.sqrt(a.shape[-1])
    attn = jax.nn.softmax(sc, axis=-1)
    b = jnp.einsum("smn,snk->smk", attn, v) @ p["w_o"]
    gamma = b @ p["w_g"] + p["b_g"]
    tau = jnp.exp(b @ p["w_t"] + p["b_t"]) + tau_min
    return gamma, tau


if __name__ == "__main__":
    S, M, N, D = 2, 8, 16, 4    # y: (S, M, N, D)
    Kp, K = 32, 16
    TAU_MIN = 0.1

    key = jax.random.PRNGKey(0)
    key_y, key_p = jax.random.split(key)
    y = jax.random.normal(key_y, (S, M, N, D), dtype=jnp.float32)
    params = init_params(key_p, nd=N * D, kp=Kp, k=K)

    g_ref, t_ref = _reference_forward(y, params, TAU_MIN)

    # f32 MXU operands: tight tolerance (approx-reciprocal softmax only delta).
    gamma, tau = recognition_net_forward(y, params, tau_min=TAU_MIN,
                                         matmul_dtype=jnp.float32)
    jax.block_until_ready((gamma, tau))
    assert gamma.shape == (S, M, K) and tau.shape == (S, M, K)
    assert jnp.allclose(gamma, g_ref, atol=2e-3, rtol=2e-3)
    assert jnp.allclose(tau, t_ref, atol=2e-3, rtol=2e-3)
    assert bool(jnp.all(tau > TAU_MIN))

    # bf16 MXU operands (default; v6e/v7x fast path): loosened tolerance.
    gamma_b, tau_b = recognition_net_forward(y, params, tau_min=TAU_MIN,
                                             matmul_dtype=jnp.bfloat16)
    jax.block_until_ready((gamma_b, tau_b))
    assert gamma_b.shape == (S, M, K) and tau_b.shape == (S, M, K)
    assert jnp.allclose(gamma_b, g_ref, atol=6e-2, rtol=6e-2)
    assert jnp.allclose(tau_b, t_ref, atol=6e-2, rtol=6e-2)
    assert bool(jnp.all(tau_b > TAU_MIN))

    print("KERNEL_OK")
</pallas_src>

<mosaic_0001>
module attributes {stable_mosaic.version = 11 : i64} {
  func.func @_rec_net_kernel(%arg0: i32, %arg1: memref<16x64xf32, #tpu.memory_space<vmem>>, %arg2: memref<64x128xf32, #tpu.memory_space<vmem>>, %arg3: memref<1x128xf32, #tpu.memory_space<vmem>>, %arg4: memref<128x128xf32, #tpu.memory_space<vmem>>, %arg5: memref<1x128xf32, #tpu.memory_space<vmem>>, %arg6: memref<128x384xf32, #tpu.memory_space<vmem>>, %arg7: memref<128x128xf32, #tpu.memory_space<vmem>>, %arg8: memref<128x128xf32, #tpu.memory_space<vmem>>, %arg9: memref<1x128xf32, #tpu.memory_space<vmem>>, %arg10: memref<16x128xf32, #tpu.memory_space<vmem>>) attributes {dimension_semantics = [#tpu.dimension_semantics<parallel>], iteration_bounds = array<i64: 1>, scalar_prefetch = 0 : i64, scratch_operands = 0 : i64, tpu.core_type = #tpu.core_type<tc>, window_params = [{transform_indices = @transform_0, window_bounds = array<i64: 16, 64>}, {pipeline_mode = #tpu.pipeline_mode<synchronous>, transform_indices = @transform_1, window_bounds = array<i64: 64, 128>}, {pipeline_mode = #tpu.pipeline_mode<synchronous>, transform_indices = @transform_2, window_bounds = array<i64: 1, 128>}, {pipeline_mode = #tpu.pipeline_mode<synchronous>, transform_indices = @transform_3, window_bounds = array<i64: 128, 128>}, {pipeline_mode = #tpu.pipeline_mode<synchronous>, transform_indices = @transform_4, window_bounds = array<i64: 1, 128>}, {pipeline_mode = #tpu.pipeline_mode<synchronous>, transform_indices = @transform_5, window_bounds = array<i64: 128, 384>}, {pipeline_mode = #tpu.pipeline_mode<synchronous>, transform_indices = @transform_6, window_bounds = array<i64: 128, 128>}, {pipeline_mode = #tpu.pipeline_mode<synchronous>, transform_indices = @transform_7, window_bounds = array<i64: 128, 128>}, {pipeline_mode = #tpu.pipeline_mode<synchronous>, transform_indices = @transform_8, window_bounds = array<i64: 1, 128>}, {transform_indices = @transform_9, window_bounds = array<i64: 16, 128>}]} {
    %c0 = arith.constant 0 : index
    %c0_0 = arith.constant 0 : index
    %0 = vector.load %arg1[%c0, %c0_0] : memref<16x64xf32, #tpu.memory_space<vmem>>, vector<16x64xf32>
    %c0_1 = arith.constant 0 : index
    %c0_2 = arith.constant 0 : index
    %1 = vector.load %arg2[%c0_1, %c0_2] : memref<64x128xf32, #tpu.memory_space<vmem>>, vector<64x128xf32>
    %cst = arith.constant dense<0.000000e+00> : vector<16x128xf32>
    %2 = tpu.matmul %0, %1, %cst {dimension_numbers = #tpu.dot_dimension_numbers<[1], [0], [0], [1], [0, 0, 1, 1], [], []>} : vector<16x64xf32>, vector<64x128xf32>, vector<16x128xf32> -> vector<16x128xf32>
    %c0_3 = arith.constant 0 : index
    %c0_4 = arith.constant 0 : index
    %3 = vector.load %arg3[%c0_3, %c0_4] : memref<1x128xf32, #tpu.memory_space<vmem>>, vector<1x128xf32>
    %4 = vector.broadcast %3 : vector<1x128xf32> to vector<16x128xf32>
    %5 = arith.addf %2, %4 : vector<16x128xf32>
    %cst_5 = arith.constant 0.000000e+00 : f32
    %6 = vector.broadcast %cst_5 : f32 to vector<16x128xf32>
    %7 = arith.maximumf %5, %6 : vector<16x128xf32>
    %c0_6 = arith.constant 0 : index
    %c0_7 = arith.constant 0 : index
    %8 = vector.load %arg4[%c0_6, %c0_7] : memref<128x128xf32, #tpu.memory_space<vmem>>, vector<128x128xf32>
    %cst_8 = arith.constant dense<0.000000e+00> : vector<16x128xf32>
    %9 = tpu.matmul %7, %8, %cst_8 {dimension_numbers = #tpu.dot_dimension_numbers<[1], [0], [0], [1], [0, 0, 1, 1], [], []>} : vector<16x128xf32>, vector<128x128xf32>, vector<16x128xf32> -> vector<16x128xf32>
    %c0_9 = arith.constant 0 : index
    %c0_10 = arith.constant 0 : index
    %10 = vector.load %arg5[%c0_9, %c0_10] : memref<1x128xf32, #tpu.memory_space<vmem>>, vector<1x128xf32>
    %11 = vector.broadcast %10 : vector<1x128xf32> to vector<16x128xf32>
    %12 = arith.addf %9, %11 : vector<16x128xf32>
    %c0_11 = arith.constant 0 : index
    %c0_12 = arith.constant 0 : index
    %13 = vector.load %arg6[%c0_11, %c0_12] : memref<128x384xf32, #tpu.memory_space<vmem>>, vector<128x384xf32>
    %cst_13 = arith.constant dense<0.000000e+00> : vector<16x384xf32>
    %14 = tpu.matmul %12, %13, %cst_13 {dimension_numbers = #tpu.dot_dimension_numbers<[1], [0], [0], [1], [0, 0, 1, 1], [], []>} : vector<16x128xf32>, vector<128x384xf32>, vector<16x384xf32> -> vector<16x384xf32>
    %15 = vector.shape_cast %14 : vector<16x384xf32> to vector<2x8x384xf32>
    %16 = vector.extract_strided_slice %15 {offsets = [0, 0, 0], sizes = [2, 8, 128], strides = [1, 1, 1]} : vector<2x8x384xf32> to vector<2x8x128xf32>
    %17 = vector.extract_strided_slice %15 {offsets = [0, 0, 128], sizes = [2, 8, 128], strides = [1, 1, 1]} : vector<2x8x384xf32> to vector<2x8x128xf32>
    %18 = vector.extract_strided_slice %15 {offsets = [0, 0, 256], sizes = [2, 8, 128], strides = [1, 1, 1]} : vector<2x8x384xf32> to vector<2x8x128xf32>
    "tpu.trace_start"() <{level = 10 : i32, message = "smk,snk->smn"}> : () -> ()
    %cst_14 = arith.constant dense<0.000000e+00> : vector<2x8x8xf32>
    %19 = tpu.matmul %16, %17, %cst_14 {dimension_numbers = #tpu.dot_dimension_numbers<[2], [2], [1], [1], [0, 0, 0, 1, 1, 1], [0], [0]>} : vector<2x8x128xf32>, vector<2x8x128xf32>, vector<2x8x8xf32> -> vector<2x8x8xf32>
    "tpu.trace_stop"() : () -> ()
    %cst_15 = arith.constant 0.176776692 : f32
    %20 = vector.broadcast %cst_15 : f32 to vector<2x8x8xf32>
    %21 = arith.mulf %19, %20 : vector<2x8x8xf32>
    %cst_16 = arith.constant dense<0xFF800000> : vector<2x8xf32>
    %22 = vector.multi_reduction <maximumf>, %21, %cst_16 [2] : vector<2x8x8xf32> to vector<2x8xf32>
    %23 = vector.shape_cast %22 : vector<2x8xf32> to vector<2x8x1xf32>
    %24 = vector.broadcast %23 : vector<2x8x1xf32> to vector<2x8x8xf32>
    %25 = arith.subf %21, %24 : vector<2x8x8xf32>
    %26 = math.exp %25 : vector<2x8x8xf32>
    %cst_17 = arith.constant dense<0.000000e+00> : vector<2x8xf32>
    %27 = vector.multi_reduction <add>, %26, %cst_17 [2] : vector<2x8x8xf32> to vector<2x8xf32>
    %28 = vector.shape_cast %27 : vector<2x8xf32> to vector<2x8x1xf32>
    %29 = tpu.reciprocal %28 {approx = true} : vector<2x8x1xf32> -> vector<2x8x1xf32>
    %30 = vector.broadcast %29 : vector<2x8x1xf32> to vector<2x8x8xf32>
    %31 = arith.mulf %26, %30 : vector<2x8x8xf32>
    "tpu.trace_start"() <{level = 10 : i32, message = "smn,snk->smk"}> : () -> ()
    %cst_18 = arith.constant dense<0.000000e+00> : vector<2x8x128xf32>
    %32 = tpu.matmul %31, %18, %cst_18 {dimension_numbers = #tpu.dot_dimension_numbers<[2], [1], [1], [2], [0, 0, 0, 1, 1, 2], [0], [0]>} : vector<2x8x8xf32>, vector<2x8x128xf32>, vector<2x8x128xf32> -> vector<2x8x128xf32>
    "tpu.trace_stop"() : () -> ()
    %33 = vector.shape_cast %32 : vector<2x8x128xf32> to vector<16x128xf32>
    %c0_19 = arith.constant 0 : index
    %c0_20 = arith.constant 0 : index
    %34 = vector.load %arg7[%c0_19, %c0_20] : memref<128x128xf32, #tpu.memory_space<vmem>>, vector<128x128xf32>
    %cst_21 = arith.constant dense<0.000000e+00> : vector<16x128xf32>
    %35 = tpu.matmul %33, %34, %cst_21 {dimension_numbers = #tpu.dot_dimension_numbers<[1], [0], [0], [1], [0, 0, 1, 1], [], []>} : vector<16x128xf32>, vector<128x128xf32>, vector<16x128xf32> -> vector<16x128xf32>
    %c0_22 = arith.constant 0 : index
    %c0_23 = arith.constant 0 : index
    %36 = vector.load %arg8[%c0_22, %c0_23] : memref<128x128xf32, #tpu.memory_space<vmem>>, vector<128x128xf32>
    %cst_24 = arith.constant dense<0.000000e+00> : vector<16x128xf32>
    %37 = tpu.matmul %35, %36, %cst_24 {dimension_numbers = #tpu.dot_dimension_numbers<[1], [0], [0], [1], [0, 0, 1, 1], [], []>} : vector<16x128xf32>, vector<128x128xf32>, vector<16x128xf32> -> vector<16x128xf32>
    %c0_25 = arith.constant 0 : index
    %c0_26 = arith.constant 0 : index
    %38 = vector.load %arg9[%c0_25, %c0_26] : memref<1x128xf32, #tpu.memory_space<vmem>>, vector<1x128xf32>
    %39 = vector.broadcast %38 : vector<1x128xf32> to vector<16x128xf32>
    %40 = arith.addf %37, %39 : vector<16x128xf32>
    %41 = tpu.iota {dimensions = array<i32: 1>} : vector<16x128xi32>
    %c16_i32 = arith.constant 16 : i32
    %42 = vector.broadcast %c16_i32 : i32 to vector<16x128xi32>
    %43 = arith.cmpi slt, %41, %42 : vector<16x128xi32>
    %44 = math.exp %40 : vector<16x128xf32>
    %cst_27 = arith.constant 1.000000e-01 : f32
    %45 = vector.broadcast %cst_27 : f32 to vector<16x128xf32>
    %46 = arith.addf %44, %45 : vector<16x128xf32>
    %47 = arith.select %43, %40, %46 : vector<16x128xi1>, vector<16x128xf32>
    %c0_28 = arith.constant 0 : index
    %c0_29 = arith.constant 0 : index
    %48 = vector.load %arg10[%c0_28, %c0_29] : memref<16x128xf32, #tpu.memory_space<vmem>>, vector<16x128xf32>
    tpu.vector_store %arg10[%c0_28, %c0_29], %47 {strides = array<i32>} : memref<16x128xf32, #tpu.memory_space<vmem>>, vector<16x128xf32>,
    return
  }
  func.func @transform_0(%arg0: i32) -> (i32, i32) {
    %c0_i32 = arith.constant 0 : i32
    %c0_i32_0 = arith.constant 0 : i32
    return %arg0, %c0_i32 : i32, i32
  }
  func.func @transform_1(%arg0: i32) -> (i32, i32) {
    %c0_i32 = arith.constant 0 : i32
    %c0_i32_0 = arith.constant 0 : i32
    %c0_i32_1 = arith.constant 0 : i32
    return %c0_i32, %c0_i32_0 : i32, i32
  }
  func.func @transform_2(%arg0: i32) -> (i32, i32) {
    %c0_i32 = arith.constant 0 : i32
    %c0_i32_0 = arith.constant 0 : i32
    %c0_i32_1 = arith.constant 0 : i32
    return %c0_i32, %c0_i32_0 : i32, i32
  }
  func.func @transform_3(%arg0: i32) -> (i32, i32) {
    %c0_i32 = arith.constant 0 : i32
    %c0_i32_0 = arith.constant 0 : i32
    %c0_i32_1 = arith.constant 0 : i32
    return %c0_i32, %c0_i32_0 : i32, i32
  }
  func.func @transform_4(%arg0: i32) -> (i32, i32) {
    %c0_i32 = arith.constant 0 : i32
    %c0_i32_0 = arith.constant 0 : i32
    %c0_i32_1 = arith.constant 0 : i32
    return %c0_i32, %c0_i32_0 : i32, i32
  }
  func.func @transform_5(%arg0: i32) -> (i32, i32) {
    %c0_i32 = arith.constant 0 : i32
    %c0_i32_0 = arith.constant 0 : i32
    %c0_i32_1 = arith.constant 0 : i32
    return %c0_i32, %c0_i32_0 : i32, i32
  }
  func.func @transform_6(%arg0: i32) -> (i32, i32) {
    %c0_i32 = arith.constant 0 : i32
    %c0_i32_0 = arith.constant 0 : i32
    %c0_i32_1 = arith.constant 0 : i32
    return %c0_i32, %c0_i32_0 : i32, i32
  }
  func.func @transform_7(%arg0: i32) -> (i32, i32) {
    %c0_i32 = arith.constant 0 : i32
    %c0_i32_0 = arith.constant 0 : i32
    %c0_i32_1 = arith.constant 0 : i32
    return %c0_i32, %c0_i32_0 : i32, i32
  }
  func.func @transform_8(%arg0: i32) -> (i32, i32) {
    %c0_i32 = arith.constant 0 : i32
    %c0_i32_0 = arith.constant 0 : i32
    %c0_i32_1 = arith.constant 0 : i32
    return %c0_i32, %c0_i32_0 : i32, i32
  }
  func.func @transform_9(%arg0: i32) -> (i32, i32) {
    %c0_i32 = arith.constant 0 : i32
    %c0_i32_0 = arith.constant 0 : i32
    return %arg0, %c0_i32 : i32, i32
  }
}

</mosaic_0001>

<llo_original>
// kernel: tpu_custom_call.1
$region0: #{tpu_custom_call.1}
  #allocation0 [shape = 'u32[]', space=smem, size = 0x4, offset = 0x4, fixed_abs, tag = 'smem constant byte address 0x4 - core index']
  #allocation1 [shape = 'u32[72,128]{1,0:T(1,128)}', space=vmem, size = 0x9000, scoped, tag = 'internal scratch']
  %s0 = inlined_call_operand.hbm [shape: f32[16,64], index: 0, kind: input, shape index: {}]
  %s1 = inlined_call_operand.hbm [shape: f32[64,128], index: 1, kind: input, shape index: {}]
  %s2 = inlined_call_operand.vmem [shape: f32[1,128], index: 2, kind: input, shape index: {}]
  %s3 = inlined_call_operand.hbm [shape: f32[128,128], index: 3, kind: input, shape index: {}]
  %s4 = inlined_call_operand.vmem [shape: f32[1,128], index: 4, kind: input, shape index: {}]
  %s5 = inlined_call_operand.hbm [shape: f32[128,384], index: 5, kind: input, shape index: {}]
  %s6 = inlined_call_operand.hbm [shape: f32[128,128], index: 6, kind: input, shape index: {}]
  %s7 = inlined_call_operand.hbm [shape: f32[128,128], index: 7, kind: input, shape index: {}]
  %s8 = inlined_call_operand.vmem [shape: f32[1,128], index: 8, kind: input, shape index: {}]
  %s9 = inlined_call_operand.hbm [shape: f32[16,128], index: 9, kind: output, shape index: {}]
  %s10 = sld [smem:[#allocation0]]
  $region70: #{tpu_custom_call.1} parent=0
    _
  %s12 = ssub.s32 1, %s10
  %s13 = scalar_select 0, %s12, %s10
  $region1: #{tpu_custom_call.1} parent=0
    #allocation2 [shape = 'u8[8192]{0}', space=vmem, size = 0x2000, scoped, tag = 'input window, operand 0, single buffered']
    #allocation3 [shape = 's32[1]{0}', space=sflag, size = 0x4, scoped, tag = 'scoped memory for tpu_custom_call.1']
    #allocation4 [shape = 's32[1]{0}', space=sflag, size = 0x4, scoped, tag = 'scoped memory for tpu_custom_call.1']
    #allocation5 [shape = 'u8[32768]{0}', space=vmem, size = 0x8000, scoped, tag = 'input window, operand 1, single buffered']
    #allocation6 [shape = 's32[1]{0}', space=sflag, size = 0x4, scoped, tag = 'scoped memory for tpu_custom_call.1']
    #allocation7 [shape = 'u8[65536]{0}', space=vmem, size = 0x10000, scoped, tag = 'input window, operand 3, single buffered']
    #allocation8 [shape = 'u8[196608]{0}', space=vmem, size = 0x30000, scoped, tag = 'input window, operand 5, single buffered']
    #allocation9 [shape = 's32[1]{0}', space=sflag, size = 0x4, scoped, tag = 'scoped memory for tpu_custom_call.1']
    #allocation10 [shape = 'u8[65536]{0}', space=vmem, size = 0x10000, scoped, tag = 'input window, operand 6, single buffered']
    #allocation11 [shape = 'u8[65536]{0}', space=vmem, size = 0x10000, scoped, tag = 'input window, operand 7, single buffered']
    #allocation12 [shape = 's32[1]{0}', space=sflag, size = 0x4, scoped, tag = 'scoped memory for tpu_custom_call.1']
    #allocation13 [shape = 'u8[8192]{0}', space=vmem, size = 0x2000, scoped, tag = 'output window, operand 0, single buffered']
    %14 = vsyncpa [#allocation3], 0
    %15 = vsyncpa [#allocation6], 0
    %16 = vsyncpa [#allocation9], 0
    %17 = vsyncpa [#allocation12], 0
    %18 = vsyncpa [#allocation4], 0
    // Predicated region
    $region2: #{tpu_custom_call.1} parent=1 // pred_check
      _
    $region3: #{tpu_custom_call.1} parent=1 // pred_check_branch
      %20 = sbr.rel (0) target = $region5
    $region4: #{tpu_custom_call.1} parent=1 // pred_region
      %22 = vsyncadd [#allocation3], 0
      %s23 = sshll.u32 %s0, 4
      %s24 = int_to_ptr.hbm [resolvable:$true] %s23
      %s25 = sshll.u32 [#allocation2], 4
      %s26 = int_to_ptr.vmem [resolvable:$true] %s25
      %31 = dma.hbm_to_vmem [thread:$0]  %s24, 256, %s26, [#allocation3], 128, 128, 8
    $region5: #{tpu_custom_call.1} parent=1 // pred_fallthru
      _
    // Predicated region
    $region6: #{tpu_custom_call.1} parent=1 // pred_check
      _
    $region7: #{tpu_custom_call.1} parent=1 // pred_check_branch
      %33 = sbr.rel (0) target = $region9
    $region8: #{tpu_custom_call.1} parent=1 // pred_region
      %35 = vsyncadd [#allocation6], 0
      %s36 = sshll.u32 %s1, 4
      %s37 = int_to_ptr.hbm [resolvable:$true] %s36
      %s38 = sshll.u32 [#allocation5], 4
      %s39 = int_to_ptr.vmem [resolvable:$true] %s38
      %44 = dma.hbm_to_vmem [thread:$0]  %s37, 1024, %s39, [#allocation6], 128, 128, 8
    $region9: #{tpu_custom_call.1} parent=1 // pred_fallthru
      _
    // Predicated region
    $region10: #{tpu_custom_call.1} parent=1 // pred_check
      _
    $region11: #{tpu_custom_call.1} parent=1 // pred_check_branch
      %46 = sbr.rel (0) target = $region13
    $region12: #{tpu_custom_call.1} parent=1 // pred_region
      _
    $region13: #{tpu_custom_call.1} parent=1 // pred_fallthru
      _
    // Predicated region
    $region14: #{tpu_custom_call.1} parent=1 // pred_check
      _
    $region15: #{tpu_custom_call.1} parent=1 // pred_check_branch
      %48 = sbr.rel (0) target = $region17
    $region16: #{tpu_custom_call.1} parent=1 // pred_region
      %50 = vsyncadd [#allocation6], 0
      %s51 = sshll.u32 %s3, 4
      %s52 = int_to_ptr.hbm [resolvable:$true] %s51
      %s53 = sshll.u32 [#allocation7], 4
      %s54 = int_to_ptr.vmem [resolvable:$true] %s53
      %59 = dma.hbm_to_vmem [thread:$0]  %s52, 2048, %s54, [#allocation6], 128, 128, 8
    $region17: #{tpu_custom_call.1} parent=1 // pred_fallthru
      _
    // Predicated region
    $region18: #{tpu_custom_call.1} parent=1 // pred_check
      _
    $region19: #{tpu_custom_call.1} parent=1 // pred_check_branch
      %61 = sbr.rel (0) target = $region21
    $region20: #{tpu_custom_call.1} parent=1 // pred_region
      _
    $region21: #{tpu_custom_call.1} parent=1 // pred_fallthru
      _
    // Predicated region
    $region22: #{tpu_custom_call.1} parent=1 // pred_check
      _
    $region23: #{tpu_custom_call.1} parent=1 // pred_check_branch
      %63 = sbr.rel (0) target = $region25
    $region24: #{tpu_custom_call.1} parent=1 // pred_region
      %65 = vsyncadd [#allocation9], 0
      %s66 = sshll.u32 %s5, 4
      %s67 = int_to_ptr.hbm [resolvable:$true] %s66
      %s68 = sshll.u32 [#allocation8], 4
      %s69 = int_to_ptr.vmem [resolvable:$true] %s68
      %74 = dma.hbm_to_vmem [thread:$0]  %s67, 6144, %s69, [#allocation9], 384, 384, 24
    $region25: #{tpu_custom_call.1} parent=1 // pred_fallthru
      _
    // Predicated region
    $region26: #{tpu_custom_call.1} parent=1 // pred_check
      _
    $region27: #{tpu_custom_call.1} parent=1 // pred_check_branch
      %76 = sbr.rel (0) target = $region29
    $region28: #{tpu_custom_call.1} parent=1 // pred_region
      %78 = vsyncadd [#allocation9], 0
      %s79 = sshll.u32 %s6, 4
      %s80 = int_to_ptr.hbm [resolvable:$true] %s79
      %s81 = sshll.u32 [#allocation10], 4
      %s82 = int_to_ptr.vmem [resolvable:$true] %s81
      %87 = dma.hbm_to_vmem [thread:$0]  %s80, 2048, %s82, [#allocation9], 128, 128, 8
    $region29: #{tpu_custom_call.1} parent=1 // pred_fallthru
      _
    // Predicated region
    $region30: #{tpu_custom_call.1} parent=1 // pred_check
      _
    $region31: #{tpu_custom_call.1} parent=1 // pred_check_branch
      %89 = sbr.rel (0) target = $region33
    $region32: #{tpu_custom_call.1} parent=1 // pred_region
      %91 = vsyncadd [#allocation12], 0
      %s92 = sshll.u32 %s7, 4
      %s93 = int_to_ptr.hbm [resolvable:$true] %s92
      %s94 = sshll.u32 [#allocation11], 4
      %s95 = int_to_ptr.vmem [resolvable:$true] %s94
      %100 = dma.hbm_to_vmem [thread:$0]  %s93, 2048, %s95, [#allocation12], 128, 128, 8
    $region33: #{tpu_custom_call.1} parent=1 // pred_fallthru
      _
    // Predicated region
    $region34: #{tpu_custom_call.1} parent=1 // pred_check
      _
    $region35: #{tpu_custom_call.1} parent=1 // pred_check_branch
      %102 = sbr.rel (0) target = $region37
    $region36: #{tpu_custom_call.1} parent=1 // pred_region
      _
    $region37: #{tpu_custom_call.1} parent=1 // pred_fallthru
      _
    // Predicated region
    $region38: #{tpu_custom_call.1} parent=1 // pred_check
      _
    $region39: #{tpu_custom_call.1} parent=1 // pred_check_branch
      %104 = sbr.rel (0) target = $region41
    $region40: #{tpu_custom_call.1} parent=1 // pred_region
      %106 = dma.done [#allocation3], 256
    $region41: #{tpu_custom_call.1} parent=1 // pred_fallthru
      _
    // Predicated region
    $region42: #{tpu_custom_call.1} parent=1 // pred_check
      _
    $region43: #{tpu_custom_call.1} parent=1 // pred_check_branch
      %108 = sbr.rel (0) target = $region45
    $region44: #{tpu_custom_call.1} parent=1 // pred_region
      %110 = dma.done [#allocation6], 1024
    $region45: #{tpu_custom_call.1} parent=1 // pred_fallthru
      _
    // Predicated region
    $region46: #{tpu_custom_call.1} parent=1 // pred_check
      _
    $region47: #{tpu_custom_call.1} parent=1 // pred_check_branch
      %112 = sbr.rel (0) target = $region49
    $region48: #{tpu_custom_call.1} parent=1 // pred_region
      %114 = dma.done [#allocation6], 2048
    $region49: #{tpu_custom_call.1} parent=1 // pred_fallthru
      _
    // Predicated region
    $region50: #{tpu_custom_call.1} parent=1 // pred_check
      _
    $region51: #{tpu_custom_call.1} parent=1 // pred_check_branch
      %116 = sbr.rel (0) target = $region53
    $region52: #{tpu_custom_call.1} parent=1 // pred_region
      %118 = dma.done [#allocation9], 6144
    $region53: #{tpu_custom_call.1} parent=1 // pred_fallthru
      _
    // Predicated region
    $region54: #{tpu_custom_call.1} parent=1 // pred_check
      _
    $region55: #{tpu_custom_call.1} parent=1 // pred_check_branch
      %120 = sbr.rel (0) target = $region57
    $region56: #{tpu_custom_call.1} parent=1 // pred_region
      %122 = dma.done [#allocation9], 2048
    $region57: #{tpu_custom_call.1} parent=1 // pred_fallthru
      _
    // Predicated region
    $region58: #{tpu_custom_call.1} parent=1 // pred_check
      _
    $region59: #{tpu_custom_call.1} parent=1 // pred_check_branch
      %124 = sbr.rel (0) target = $region61
    $region60: #{tpu_custom_call.1} parent=1 // pred_region
      %126 = dma.done [#allocation12], 2048
    $region61: #{tpu_custom_call.1} parent=1 // pred_fallthru
      _
    %v127 = vld [vmem:[#allocation2] sm:$0xff]
    %v128 = vld [vmem:[#allocation2 + $0x8] sm:$0xff]
    %v129 = vld [vmem:[#allocation5] sm:$0xff]
    %v130 = vld [vmem:[#allocation5 + $0x8] sm:$0xff]
    %v131 = vld [vmem:[#allocation5 + $0x10] sm:$0xff]
    %v132 = vld [vmem:[#allocation5 + $0x18] sm:$0xff]
    %v133 = vld [vmem:[#allocation5 + $0x20] sm:$0xff]
    %v134 = vld [vmem:[#allocation5 + $0x28] sm:$0xff]
    %v135 = vld [vmem:[#allocation5 + $0x30] sm:$0xff]
    %v136 = vld [vmem:[#allocation5 + $0x38] sm:$0xff]
    %v137 = vld [vmem:[%s2] sm:$0x1]
    %v139 = vperm.slane %v137, 0
    %vm141 = vcmask 523264
    %v143 = vsel %vm141, %v127, 0
    %v146 = vsel %vm141, %v128, 0
    %148 = vmatpush.msra.mxu0 0.0
    %149 = vmatpush.msra.mxu0 0.0
    %150 = vmatpush.msra.mxu0 0.0
    %151 = vmatpush.msra.mxu0 0.0
    %152 = vmatpush.msra.mxu0 0.0
    %153 = vmatpush.msra.mxu0 0.0
    %154 = vmatpush.msra.mxu0 0.0
    %155 = vmatpush.msra.mxu0 0.0
    %156 = vmatpush.msra.mxu0 %v136
    %157 = vmatpush.msra.mxu0 %v135
    %158 = vmatpush.msra.mxu0 %v134
    %159 = vmatpush.msra.mxu0 %v133
    %160 = vmatpush.msra.mxu0 %v132
    %161 = vmatpush.msra.mxu0 %v131
    %162 = vmatpush.msra.mxu0 %v130
    %163 = vmatpush.msra.mxu0 %v129
    %164 = vmatmul.f32.gmra.mxu0 %v143
    %v165 = vpop.f32.mrf.mxu0
    %v166 = vadd.f32 %v139, %v165
    %167 = vmatmul.f32.gmra.mxu0 %v146
    %v168 = vpop.f32.mrf.mxu0
    %v169 = vadd.f32 %v139, %v168
    %170 = vdwg.mxu0
    %v171 = vmax.f32 %v166, 0.0
    %v172 = vmax.f32 %v169, 0.0
    %v173 = vld [vmem:[#allocation7] sm:$0xff]
    %v174 = vld [vmem:[#allocation7 + $0x8] sm:$0xff]
    %v175 = vld [vmem:[#allocation7 + $0x10] sm:$0xff]
    %v176 = vld [vmem:[#allocation7 + $0x18] sm:$0xff]
    %v177 = vld [vmem:[#allocation7 + $0x20] sm:$0xff]
    %v178 = vld [vmem:[#allocation7 + $0x28] sm:$0xff]
    %v179 = vld [vmem:[#allocation7 + $0x30] sm:$0xff]
    %v180 = vld [vmem:[#allocation7 + $0x38] sm:$0xff]
    %v181 = vld [vmem:[#allocation7 + $0x40] sm:$0xff]
    %v182 = vld [vmem:[#allocation7 + $0x48] sm:$0xff]
    %v183 = vld [vmem:[#allocation7 + $0x50] sm:$0xff]
    %v184 = vld [vmem:[#allocation7 + $0x58] sm:$0xff]
    %v185 = vld [vmem:[#allocation7 + $0x60] sm:$0xff]
    %v186 = vld [vmem:[#allocation7 + $0x68] sm:$0xff]
    %v187 = vld [vmem:[#allocation7 + $0x70] sm:$0xff]
    %v188 = vld [vmem:[#allocation7 + $0x78] sm:$0xff]
    %v189 = vld [vmem:[%s4] sm:$0x1]
    %v191 = vperm.slane %v189, 0
    %193 = vmatpush.msra.mxu0 %v188
    %194 = vmatpush.msra.mxu0 %v187
    %195 = vmatpush.msra.mxu0 %v186
    %196 = vmatpush.msra.mxu0 %v185
    %197 = vmatpush.msra.mxu0 %v184
    %198 = vmatpush.msra.mxu0 %v183
    %199 = vmatpush.msra.mxu0 %v182
    %200 = vmatpush.msra.mxu0 %v181
    %201 = vmatpush.msra.mxu0 %v180
    %202 = vmatpush.msra.mxu0 %v179
    %203 = vmatpush.msra.mxu0 %v178
    %204 = vmatpush.msra.mxu0 %v177
    %205 = vmatpush.msra.mxu0 %v176
    %206 = vmatpush.msra.mxu0 %v175
    %207 = vmatpush.msra.mxu0 %v174
    %208 = vmatpush.msra.mxu0 %v173
    %209 = vmatmul.f32.gmra.mxu0 %v171
    %v210 = vpop.f32.mrf.mxu0
    %v211 = vadd.f32 %v191, %v210
    %212 = vmatmul.f32.gmra.mxu0 %v172
    %v213 = vpop.f32.mrf.mxu0
    %v214 = vadd.f32 %v191, %v213
    %215 = vdwg.mxu0
    %v216 = vld [vmem:[#allocation8] sm:$0xff]
    %v217 = vld [vmem:[#allocation8 + $0x8] sm:$0xff]
    %v218 = vld [vmem:[#allocation8 + $0x10] sm:$0xff]
    %v219 = vld [vmem:[#allocation8 + $0x18] sm:$0xff]
    %v220 = vld [vmem:[#allocation8 + $0x20] sm:$0xff]
    %v221 = vld [vmem:[#allocation8 + $0x28] sm:$0xff]
    %v222 = vld [vmem:[#allocation8 + $0x30] sm:$0xff]
    %v223 = vld [vmem:[#allocation8 + $0x38] sm:$0xff]
    %v224 = vld [vmem:[#allocation8 + $0x40] sm:$0xff]
    %v225 = vld [vmem:[#allocation8 + $0x48] sm:$0xff]
    %v226 = vld [vmem:[#allocation8 + $0x50] sm:$0xff]
    %v227 = vld [vmem:[#allocation8 + $0x58] sm:$0xff]
    %v228 = vld [vmem:[#allocation8 + $0x60] sm:$0xff]
    %v229 = vld [vmem:[#allocation8 + $0x68] sm:$0xff]
    %v230 = vld [vmem:[#allocation8 + $0x70] sm:$0xff]
    %v231 = vld [vmem:[#allocation8 + $0x78] sm:$0xff]
    %v232 = vld [vmem:[#allocation8 + $0x80] sm:$0xff]
    %v233 = vld [vmem:[#allocation8 + $0x88] sm:$0xff]
    %v234 = vld [vmem:[#allocation8 + $0x90] sm:$0xff]
    %v235 = vld [vmem:[#allocation8 + $0x98] sm:$0xff]
    %v236 = vld [vmem:[#allocation8 + $0xa0] sm:$0xff]
    %v237 = vld [vmem:[#allocation8 + $0xa8] sm:$0xff]
    %v238 = vld [vmem:[#allocation8 + $0xb0] sm:$0xff]
    %v239 = vld [vmem:[#allocation8 + $0xb8] sm:$0xff]
    %v240 = vld [vmem:[#allocation8 + $0xc0] sm:$0xff]
    %v241 = vld [vmem:[#allocation8 + $0xc8] sm:$0xff]
    %v242 = vld [vmem:[#allocation8 + $0xd0] sm:$0xff]
    %v243 = vld [vmem:[#allocation8 + $0xd8] sm:$0xff]
    %v244 = vld [vmem:[#allocation8 + $0xe0] sm:$0xff]
    %v245 = vld [vmem:[#allocation8 + $0xe8] sm:$0xff]
    %v246 = vld [vmem:[#allocation8 + $0xf0] sm:$0xff]
    %v247 = vld [vmem:[#allocation8 + $0xf8] sm:$0xff]
    %v248 = vld [vmem:[#allocation8 + $0x100] sm:$0xff]
    %v249 = vld [vmem:[#allocation8 + $0x108] sm:$0xff]
    %v250 = vld [vmem:[#allocation8 + $0x110] sm:$0xff]
    %v251 = vld [vmem:[#allocation8 + $0x118] sm:$0xff]
    %v252 = vld [vmem:[#allocation8 + $0x120] sm:$0xff]
    %v253 = vld [vmem:[#allocation8 + $0x128] sm:$0xff]
    %v254 = vld [vmem:[#allocation8 + $0x130] sm:$0xff]
    %v255 = vld [vmem:[#allocation8 + $0x138] sm:$0xff]
    %v256 = vld [vmem:[#allocation8 + $0x140] sm:$0xff]
    %v257 = vld [vmem:[#allocation8 + $0x148] sm:$0xff]
    %v258 = vld [vmem:[#allocation8 + $0x150] sm:$0xff]
    %v259 = vld [vmem:[#allocation8 + $0x158] sm:$0xff]
    %v260 = vld [vmem:[#allocation8 + $0x160] sm:$0xff]
    %v261 = vld [vmem:[#allocation8 + $0x168] sm:$0xff]
    %v262 = vld [vmem:[#allocation8 + $0x170] sm:$0xff]
    %v263 = vld [vmem:[#allocation8 + $0x178] sm:$0xff]
    %264 = vmatpush.msra.mxu0 %v261
    %265 = vmatpush.msra.mxu0 %v258
    %266 = vmatpush.msra.mxu0 %v255
    %267 = vmatpush.msra.mxu0 %v252
    %268 = vmatpush.msra.mxu0 %v249
    %269 = vmatpush.msra.mxu0 %v246
    %270 = vmatpush.msra.mxu0 %v243
    %271 = vmatpush.msra.mxu0 %v240
    %272 = vmatpush.msra.mxu0 %v237
    %273 = vmatpush.msra.mxu0 %v234
    %274 = vmatpush.msra.mxu0 %v231
    %275 = vmatpush.msra.mxu0 %v228
    %276 = vmatpush.msra.mxu0 %v225
    %277 = vmatpush.msra.mxu0 %v222
    %278 = vmatpush.msra.mxu0 %v219
    %279 = vmatpush.msra.mxu0 %v216
    %280 = vmatmul.f32.gmra.mxu0 %v211
    %v281 = vpop.f32.mrf.mxu0
    %v282 = vadd.f32 0.0, %v281
    %283 = vmatmul.f32.gmra.mxu0 %v214
    %v284 = vpop.f32.mrf.mxu0
    %v285 = vadd.f32 0.0, %v284
    %286 = vdwg.mxu0
    %287 = vmatpush.msra.mxu0 %v262
    %288 = vmatpush.msra.mxu0 %v259
    %289 = vmatpush.msra.mxu0 %v256
    %290 = vmatpush.msra.mxu0 %v253
    %291 = vmatpush.msra.mxu0 %v250
    %292 = vmatpush.msra.mxu0 %v247
    %293 = vmatpush.msra.mxu0 %v244
    %294 = vmatpush.msra.mxu0 %v241
    %295 = vmatpush.msra.mxu0 %v238
    %296 = vmatpush.msra.mxu0 %v235
    %297 = vmatpush.msra.mxu0 %v232
    %298 = vmatpush.msra.mxu0 %v229
    %299 = vmatpush.msra.mxu0 %v226
    %300 = vmatpush.msra.mxu0 %v223
    %301 = vmatpush.msra.mxu0 %v220
    %302 = vmatpush.msra.mxu0 %v217
    %303 = vmatmul.f32.gmra.mxu0 %v211
    %v304 = vpop.f32.mrf.mxu0
    %v305 = vadd.f32 0.0, %v304
    %306 = vmatmul.f32.gmra.mxu0 %v214
    %v307 = vpop.f32.mrf.mxu0
    %v308 = vadd.f32 0.0, %v307
    %309 = vdwg.mxu0
    %310 = vmatpush.msra.mxu0 %v263
    %311 = vmatpush.msra.mxu0 %v260
    %312 = vmatpush.msra.mxu0 %v257
    %313 = vmatpush.msra.mxu0 %v254
    %314 = vmatpush.msra.mxu0 %v251
    %315 = vmatpush.msra.mxu0 %v248
    %316 = vmatpush.msra.mxu0 %v245
    %317 = vmatpush.msra.mxu0 %v242
    %318 = vmatpush.msra.mxu0 %v239
    %319 = vmatpush.msra.mxu0 %v236
    %320 = vmatpush.msra.mxu0 %v233
    %321 = vmatpush.msra.mxu0 %v230
    %322 = vmatpush.msra.mxu0 %v227
    %323 = vmatpush.msra.mxu0 %v224
    %324 = vmatpush.msra.mxu0 %v221
    %325 = vmatpush.msra.mxu0 %v218
    %326 = vmatmul.f32.gmra.mxu0 %v211
    %v327 = vpop.f32.mrf.mxu0
    %v328 = vadd.f32 0.0, %v327
    %329 = vmatmul.f32.gmra.mxu0 %v214
    %v330 = vpop.f32.mrf.mxu0
    %v331 = vadd.f32 0.0, %v330
    %332 = vdwg.mxu0
    %333 = vmatpush.xpose.msra.mxu0 0.0
    %334 = vmatpush.xpose.msra.mxu0 0.0
    %335 = vmatpush.xpose.msra.mxu0 0.0
    %336 = vmatpush.xpose.msra.mxu0 0.0
    %337 = vmatpush.xpose.msra.mxu0 0.0
    %338 = vmatpush.xpose.msra.mxu0 0.0
    %339 = vmatpush.xpose.msra.mxu0 0.0
    %340 = vmatpush.xpose.msra.mxu0 0.0
    %341 = vmatpush.xpose.msra.mxu0 0.0
    %342 = vmatpush.xpose.msra.mxu0 0.0
    %343 = vmatpush.xpose.msra.mxu0 0.0
    %344 = vmatpush.xpose.msra.mxu0 0.0
    %345 = vmatpush.xpose.msra.mxu0 0.0
    %346 = vmatpush.xpose.msra.mxu0 0.0
    %347 = vmatpush.xpose.msra.mxu0 0.0
    %348 = vmatpush.xpose.msra.mxu0 %v305
    %349 = vmatmul.f32.gmra.mxu0 %v282
    %v350 = vpop.f32.mrf.mxu0
    %v351 = vadd.f32 0.0, %v350
    %352 = vdwg.mxu0
    %353 = vmatpush.xpose.msra.mxu0 0.0
    %354 = vmatpush.xpose.msra.mxu0 0.0
    %355 = vmatpush.xpose.msra.mxu0 0.0
    %356 = vmatpush.xpose.msra.mxu0 0.0
    %357 = vmatpush.xpose.msra.mxu0 0.0
    %358 = vmatpush.xpose.msra.mxu0 0.0
    %359 = vmatpush.xpose.msra.mxu0 0.0
    %360 = vmatpush.xpose.msra.mxu0 0.0
    %361 = vmatpush.xpose.msra.mxu0 0.0
    %362 = vmatpush.xpose.msra.mxu0 0.0
    %363 = vmatpush.xpose.msra.mxu0 0.0
    %364 = vmatpush.xpose.msra.mxu0 0.0
    %365 = vmatpush.xpose.msra.mxu0 0.0
    %366 = vmatpush.xpose.msra.mxu0 0.0
    %367 = vmatpush.xpose.msra.mxu0 0.0
    %368 = vmatpush.xpose.msra.mxu0 %v308
    %369 = vmatmul.f32.gmra.mxu0 %v285
    %v370 = vpop.f32.mrf.mxu0
    %v371 = vadd.f32 0.0, %v370
    %372 = vdwg.mxu0
    %v373 = vmul.f32 %v351, 0.17677669
    %v374 = vmul.f32 %v371, 0.17677669
    %vm375 = vcmask 64512
    %v376 = vsel %vm375, %v373, -inf
    %377 = vmax.xlane.f32.xlu0 %v376
    %v378 = vpop.xlane.xlu0 %377
    %v379 = vsel %vm375, %v374, -inf
    %380 = vmax.xlane.f32.xlu0 %v379
    %v381 = vpop.xlane.xlu0 %380
    %v382 = vsub.f32 %v373, %v378
    %v383 = vsub.f32 %v374, %v381
    %v384 = vmul.f32 %v382, 1.442695
    %v385 = vpow.pop %v384
    %v386 = vmul.f32 %v383, 1.442695
    %v387 = vpow.pop %v386
    %v388 = vsel %vm375, %v385, 0.0
    %389 = vadd.xlane.f32.xlu0 %v388
    %v390 = vpop.xlane.xlu0 %389
    %v391 = vsel %vm375, %v387, 0.0
    %392 = vadd.xlane.f32.xlu0 %v391
    %v393 = vpop.xlane.xlu0 %392
    %v394 = vrcp.pop %v390
    %v395 = vrcp.pop %v393
    %v396 = vmul.f32 %v385, %v394
    %v397 = vmul.f32 %v387, %v395
    %v399 = vsel %vm375, %v396, 0
    %401 = vmatpush.msra.mxu0 0.0
    %402 = vmatpush.msra.mxu0 0.0
    %403 = vmatpush.msra.mxu0 0.0
    %404 = vmatpush.msra.mxu0 0.0
    %405 = vmatpush.msra.mxu0 0.0
    %406 = vmatpush.msra.mxu0 0.0
    %407 = vmatpush.msra.mxu0 0.0
    %408 = vmatpush.msra.mxu0 0.0
    %409 = vmatpush.msra.mxu0 0.0
    %410 = vmatpush.msra.mxu0 0.0
    %411 = vmatpush.msra.mxu0 0.0
    %412 = vmatpush.msra.mxu0 0.0
    %413 = vmatpush.msra.mxu0 0.0
    %414 = vmatpush.msra.mxu0 0.0
    %415 = vmatpush.msra.mxu0 0.0
    %416 = vmatpush.msra.mxu0 %v328
    %417 = vmatmul.f32.gmra.mxu0 %v399
    %v418 = vpop.f32.mrf.mxu0
    %v419 = vadd.f32 0.0, %v418
    %420 = vdwg.mxu0
    %v422 = vsel %vm375, %v397, 0
    %424 = vmatpush.msra.mxu0 0.0
    %425 = vmatpush.msra.mxu0 0.0
    %426 = vmatpush.msra.mxu0 0.0
    %427 = vmatpush.msra.mxu0 0.0
    %428 = vmatpush.msra.mxu0 0.0
    %429 = vmatpush.msra.mxu0 0.0
    %430 = vmatpush.msra.mxu0 0.0
    %431 = vmatpush.msra.mxu0 0.0
    %432 = vmatpush.msra.mxu0 0.0
    %433 = vmatpush.msra.mxu0 0.0
    %434 = vmatpush.msra.mxu0 0.0
    %435 = vmatpush.msra.mxu0 0.0
    %436 = vmatpush.msra.mxu0 0.0
    %437 = vmatpush.msra.mxu0 0.0
    %438 = vmatpush.msra.mxu0 0.0
    %439 = vmatpush.msra.mxu0 %v331
    %440 = vmatmul.f32.gmra.mxu0 %v422
    %v441 = vpop.f32.mrf.mxu0
    %v442 = vadd.f32 0.0, %v441
    %443 = vdwg.mxu0
    %v444 = vld [vmem:[#allocation10] sm:$0xff]
    %v445 = vld [vmem:[#allocation10 + $0x8] sm:$0xff]
    %v446 = vld [vmem:[#allocation10 + $0x10] sm:$0xff]
    %v447 = vld [vmem:[#allocation10 + $0x18] sm:$0xff]
    %v448 = vld [vmem:[#allocation10 + $0x20] sm:$0xff]
    %v449 = vld [vmem:[#allocation10 + $0x28] sm:$0xff]
    %v450 = vld [vmem:[#allocation10 + $0x30] sm:$0xff]
    %v451 = vld [vmem:[#allocation10 + $0x38] sm:$0xff]
    %v452 = vld [vmem:[#allocation10 + $0x40] sm:$0xff]
    %v453 = vld [vmem:[#allocation10 + $0x48] sm:$0xff]
    %v454 = vld [vmem:[#allocation10 + $0x50] sm:$0xff]
    %v455 = vld [vmem:[#allocation10 + $0x58] sm:$0xff]
    %v456 = vld [vmem:[#allocation10 + $0x60] sm:$0xff]
    %v457 = vld [vmem:[#allocation10 + $0x68] sm:$0xff]
    %v458 = vld [vmem:[#allocation10 + $0x70] sm:$0xff]
    %v459 = vld [vmem:[#allocation10 + $0x78] sm:$0xff]
    %460 = vmatpush.msra.mxu0 %v459
    %461 = vmatpush.msra.mxu0 %v458
    %462 = vmatpush.msra.mxu0 %v457
    %463 = vmatpush.msra.mxu0 %v456
    %464 = vmatpush.msra.mxu0 %v455
    %465 = vmatpush.msra.mxu0 %v454
    %466 = vmatpush.msra.mxu0 %v453
    %467 = vmatpush.msra.mxu0 %v452
    %468 = vmatpush.msra.mxu0 %v451
    %469 = vmatpush.msra.mxu0 %v450
    %470 = vmatpush.msra.mxu0 %v449
    %471 = vmatpush.msra.mxu0 %v448
    %472 = vmatpush.msra.mxu0 %v447
    %473 = vmatpush.msra.mxu0 %v446
    %474 = vmatpush.msra.mxu0 %v445
    %475 = vmatpush.msra.mxu0 %v444
    %476 = vmatmul.f32.gmra.mxu0 %v419
    %v477 = vpop.f32.mrf.mxu0
    %v478 = vadd.f32 0.0, %v477
    %479 = vmatmul.f32.gmra.mxu0 %v442
    %v480 = vpop.f32.mrf.mxu0
    %v481 = vadd.f32 0.0, %v480
    %482 = vdwg.mxu0
    %v483 = vld [vmem:[#allocation11] sm:$0xff]
    %v484 = vld [vmem:[#allocation11 + $0x8] sm:$0xff]
    %v485 = vld [vmem:[#allocation11 + $0x10] sm:$0xff]
    %v486 = vld [vmem:[#allocation11 + $0x18] sm:$0xff]
    %v487 = vld [vmem:[#allocation11 + $0x20] sm:$0xff]
    %v488 = vld [vmem:[#allocation11 + $0x28] sm:$0xff]
    %v489 = vld [vmem:[#allocation11 + $0x30] sm:$0xff]
    %v490 = vld [vmem:[#allocation11 + $0x38] sm:$0xff]
    %v491 = vld [vmem:[#allocation11 + $0x40] sm:$0xff]
    %v492 = vld [vmem:[#allocation11 + $0x48] sm:$0xff]
    %v493 = vld [vmem:[#allocation11 + $0x50] sm:$0xff]
    %v494 = vld [vmem:[#allocation11 + $0x58] sm:$0xff]
    %v495 = vld [vmem:[#allocation11 + $0x60] sm:$0xff]
    %v496 = vld [vmem:[#allocation11 + $0x68] sm:$0xff]
    %v497 = vld [vmem:[#allocation11 + $0x70] sm:$0xff]
    %v498 = vld [vmem:[#allocation11 + $0x78] sm:$0xff]
    %v499 = vld [vmem:[%s8] sm:$0x1]
    %v501 = vperm.slane %v499, 0
    %503 = vmatpush.msra.mxu0 %v498
    %504 = vmatpush.msra.mxu0 %v497
    %505 = vmatpush.msra.mxu0 %v496
    %506 = vmatpush.msra.mxu0 %v495
    %507 = vmatpush.msra.mxu0 %v494
    %508 = vmatpush.msra.mxu0 %v493
    %509 = vmatpush.msra.mxu0 %v492
    %510 = vmatpush.msra.mxu0 %v491
    %511 = vmatpush.msra.mxu0 %v490
    %512 = vmatpush.msra.mxu0 %v489
    %513 = vmatpush.msra.mxu0 %v488
    %514 = vmatpush.msra.mxu0 %v487
    %515 = vmatpush.msra.mxu0 %v486
    %516 = vmatpush.msra.mxu0 %v485
    %517 = vmatpush.msra.mxu0 %v484
    %518 = vmatpush.msra.mxu0 %v483
    %519 = vmatmul.f32.gmra.mxu0 %v478
    %v520 = vpop.f32.mrf.mxu0
    %v521 = vadd.f32 %v501, %v520
    %522 = vmatmul.f32.gmra.mxu0 %v481
    %v523 = vpop.f32.mrf.mxu0
    %v524 = vadd.f32 %v501, %v523
    %525 = vdwg.mxu0
    %v526 = vlaneseq
    %v527 = vand.u32 %v526, 127
    %vm528 = vcmp.lt.s32.totalorder %v527, 16
    %v529 = vmul.f32 %v521, 1.442695
    %v530 = vpow.pop %v529
    %v531 = vmul.f32 %v524, 1.442695
    %v532 = vpow.pop %v531
    %v533 = vadd.f32 %v530, 0.1
    %v534 = vadd.f32 %v532, 0.1
    %v535 = vsel %vm528, %v521, %v533
    %v536 = vsel %vm528, %v524, %v534
    %537 = vst [vmem:[#allocation13] sm:$0xff] %v535
    %538 = vst [vmem:[#allocation13 + $0x8] sm:$0xff] %v536
    // Predicated region
    $region62: #{tpu_custom_call.1} parent=1 // pred_check
      _
    $region63: #{tpu_custom_call.1} parent=1 // pred_check_branch
      %540 = sbr.rel (0) target = $region65
    $region64: #{tpu_custom_call.1} parent=1 // pred_region
      %542 = vsyncadd [#allocation4], 0
      %s543 = sshll.u32 [#allocation13], 4
      %s544 = int_to_ptr.vmem [resolvable:$true] %s543
      %s545 = sshll.u32 %s9, 4
      %s546 = int_to_ptr.hbm [resolvable:$true] %s545
      %551 = dma.vmem_to_hbm [thread:$0]  %s544, 256, %s546, [#allocation4], 128, 128, 8
    $region65: #{tpu_custom_call.1} parent=1 // pred_fallthru
      _
    // Predicated region
    $region66: #{tpu_custom_call.1} parent=1 // pred_check
      _
    $region67: #{tpu_custom_call.1} parent=1 // pred_check_branch
      %553 = sbr.rel (0) target = $region69
    $region68: #{tpu_custom_call.1} parent=1 // pred_region
      %555 = dma.done [#allocation4], 256
    $region69: #{tpu_custom_call.1} parent=1 // pred_fallthru
      _
    %556 = vsyncpa [#allocation3], 1
    %557 = vsyncpa [#allocation6], 1
    %558 = vsyncpa [#allocation9], 1
    %559 = vsyncpa [#allocation12], 1
    %560 = vsyncpa [#allocation4], 1

</llo_original>
